<compile_context>
chip_gen: v7x
topology: tpu7x:2x2x1
jax: 0.10.0
libtpu: 0.0.40
codegen_flags: <defaults>
</compile_context>

<pallas_src>
import functools
import math

import jax
import jax.numpy as jnp
from jax import lax
from jax.experimental import pallas as pl
from jax.experimental.pallas import tpu as pltpu


def _round_up(x, m):
    return ((x + m - 1) // m) * m


def _vmem_budgets():
    """Per-generation VMEM sizing (v5e/v6e: 128 MiB, v7x: 64 MiB per TC)."""
    cap = 64 * 1024 * 1024
    try:
        info = pltpu.get_tpu_info()
        cap = int(getattr(info, "vmem_capacity_bytes", cap) or cap)
    except Exception:
        pass
    vmem_limit = min(int(cap * 0.80), 100 * 1024 * 1024)
    tile_budget = min(int(cap * 0.62), 80 * 1024 * 1024)
    return vmem_limit, tile_budget


def _clip_tile(dim, desired, granule):
    """Largest layout-legal tile <= min(dim, desired).

    Legal means: multiple of `granule` (8 / sublane-pack for second-to-last,
    128 for last/lane dim) OR equal to the full array dim.
    """
    if dim <= granule:
        return dim                                  # full-dim block, always legal
    if dim <= desired:
        return dim if dim % granule == 0 else granule * (dim // granule)
    return desired                                  # desired is a multiple of granule


# ----------------------------------------------------------------------------
# Kernels.  Weight tile is in PyTorch (out, in) = (tn, K/tk) layout; contract
# over the last dim of both operands == x @ W.T.  f32 MXU accumulation.
# ----------------------------------------------------------------------------
def _dot_xwT(x, w, cast_bf16):
    if cast_bf16:
        x = x.astype(jnp.bfloat16)
        w = w.astype(jnp.bfloat16)
    return lax.dot_general(
        x, w,
        dimension_numbers=(((1,), (1,)), ((), ())),
        preferred_element_type=jnp.float32,
    )


def _fullk_kernel(x_ref, w_ref, o_ref, *, cast_bf16):
    o_ref[...] = _dot_xwT(x_ref[...], w_ref[...], cast_bf16).astype(o_ref.dtype)


def _tiledk_kernel_accout(x_ref, w_ref, o_ref, *, cast_bf16):
    # Output block index ignores k -> block stays VMEM-resident across the
    # reduction; accumulate directly into it (f32 output only).
    @pl.when(pl.program_id(2) == 0)
    def _():
        o_ref[...] = jnp.zeros_like(o_ref)

    o_ref[...] += _dot_xwT(x_ref[...], w_ref[...], cast_bf16)


def _tiledk_kernel_scratch(x_ref, w_ref, o_ref, acc_ref, *, cast_bf16):
    @pl.when(pl.program_id(2) == 0)
    def _():
        acc_ref[...] = jnp.zeros_like(acc_ref)

    acc_ref[...] += _dot_xwT(x_ref[...], w_ref[...], cast_bf16)

    @pl.when(pl.program_id(2) == pl.num_programs(2) - 1)
    def _():
        o_ref[...] = acc_ref[...].astype(o_ref.dtype)


# ----------------------------------------------------------------------------
# Wrapper
# ----------------------------------------------------------------------------
def predictor_forward(x, weight, *, allow_bf16_compute=False):
    """y = x @ weight.T   (weight in PyTorch nn.Linear layout (d_vocab, d_model)).

    `allow_bf16_compute=True` casts f32 tiles to bf16 inside the kernel (f32
    accumulation kept) for full MXU rate on bf16-only MXUs; default False to
    preserve the module's f32 numerics.
    """
    orig_shape = x.shape
    d_model = orig_shape[-1]
    d_vocab, wk = weight.shape
    assert wk == d_model, "weight must be (d_vocab, d_model)"
    M = math.prod(orig_shape[:-1]) if len(orig_shape) > 1 else 1
    K, N = d_model, d_vocab

    x2d = x.reshape(M, K)
    out_dtype = x.dtype
    xb = jnp.dtype(x.dtype).itemsize
    wb = jnp.dtype(weight.dtype).itemsize
    ob = jnp.dtype(out_dtype).itemsize
    cast_bf16 = bool(allow_bf16_compute) and x.dtype == jnp.float32 and weight.dtype == jnp.float32

    vmem_limit, tile_budget = _vmem_budgets()
    sub = max(8, 32 // xb)  # sublane pack: 8 f32, 16 bf16, 32 int8/fp8

    # Candidate tiles (largest first; tn is the main re-streaming knob).
    tn_cands = []
    for d in (1024, 512, 256):
        t = _clip_tile(N, d, 128)
        if t not in tn_cands:
            tn_cands.append(t)
    tm_cands = []
    for d in (512, 256, 128):
        t = _clip_tile(M, d, sub)
        if t not in tm_cands:
            tm_cands.append(t)

    # ---- full-K (collapsed reduction) path when double-buffered tiles fit ---
    full_k, tm, tn = False, None, None
    for tn_c in tn_cands:
        for tm_c in tm_cands:
            footprint = 2 * (tm_c * K * xb + tn_c * K * wb) + 2 * tm_c * tn_c * ob
            if footprint <= tile_budget:
                tm, tn, full_k = tm_c, tn_c, True
                break
        if full_k:
            break

    if full_k:
        # Put the bigger operand on the OUTER axis so its block index is
        # constant across the inner loop -> fetched from HBM exactly once.
        n_outer = (N * wb) >= (M * xb)
        if n_outer:
            grid = (pl.cdiv(N, tn), pl.cdiv(M, tm))
            x_spec = pl.BlockSpec((tm, K), lambda j, i: (i, 0))
            w_spec = pl.BlockSpec((tn, K), lambda j, i: (j, 0))
            o_spec = pl.BlockSpec((tm, tn), lambda j, i: (i, j))
        else:
            grid = (pl.cdiv(M, tm), pl.cdiv(N, tn))
            x_spec = pl.BlockSpec((tm, K), lambda i, j: (i, 0))
            w_spec = pl.BlockSpec((tn, K), lambda i, j: (j, 0))
            o_spec = pl.BlockSpec((tm, tn), lambda i, j: (i, j))

        out = pl.pallas_call(
            functools.partial(_fullk_kernel, cast_bf16=cast_bf16),
            out_shape=jax.ShapeDtypeStruct((M, N), out_dtype),
            grid_spec=pltpu.PrefetchScalarGridSpec(
                num_scalar_prefetch=0,
                grid=grid,
                in_specs=[x_spec, w_spec],
                out_specs=o_spec,
            ),
            compiler_params=pltpu.CompilerParams(
                dimension_semantics=("parallel", "parallel"),
                vmem_limit_bytes=vmem_limit,
            ),
        )(x2d, weight)
        return out.reshape(*orig_shape[:-1], N)

    # ---- K-tiled fallback (very large d_model) -------------------------------
    # K must be exact: pick tk (multiple of 128) that divides K; only if K is
    # not a multiple of 128 do we zero-pad K (zeros keep the matmul exact).
    if K % 128 == 0:
        Kp, x_in, w_in = K, x2d, weight
    else:
        Kp = _round_up(K, 512)
        x_in = jnp.pad(x2d, ((0, 0), (0, Kp - K)))
        w_in = jnp.pad(weight, ((0, 0), (0, Kp - K)))

    def _pick_tk(max_tk):
        for cand in (2048, 1792, 1536, 1280, 1024, 896, 768, 640, 512, 384, 256, 128):
            if cand <= max_tk and Kp % cand == 0:
                return cand
        return None

    acc_in_out = (out_dtype == jnp.float32)

    chosen = None
    for tk_cap in (2048, 1024, 512, 256, 128):
        tk_c = _pick_tk(tk_cap)
        if tk_c is None:
            continue
        for tn_c in tn_cands:
            for tm_c in tm_cands:
                fp = (2 * (tm_c * tk_c * xb + tn_c * tk_c * wb)
                      + 2 * tm_c * tn_c * ob
                      + (0 if acc_in_out else tm_c * tn_c * 4))
                if fp <= tile_budget:
                    chosen = (tm_c, tn_c, tk_c)
                    break
            if chosen:
                break
        if chosen:
            break
    if chosen is None:  # defensive; the smallest combo is only a few MiB
        chosen = (tm_cands[-1], tn_cands[-1], _pick_tk(128) or 128)
    tm, tn, tk = chosen

    grid = (pl.cdiv(N, tn), pl.cdiv(M, tm), Kp // tk)  # vocab outer, K innermost
    x_spec = pl.BlockSpec((tm, tk), lambda j, i, k: (i, k))
    w_spec = pl.BlockSpec((tn, tk), lambda j, i, k: (j, k))
    o_spec = pl.BlockSpec((tm, tn), lambda j, i, k: (i, j))

    if acc_in_out:
        kernel = functools.partial(_tiledk_kernel_accout, cast_bf16=cast_bf16)
        scratch = []
    else:
        kernel = functools.partial(_tiledk_kernel_scratch, cast_bf16=cast_bf16)
        scratch = [pltpu.VMEM((tm, tn), jnp.float32)]

    out = pl.pallas_call(
        kernel,
        out_shape=jax.ShapeDtypeStruct((M, N), out_dtype),
        grid_spec=pltpu.PrefetchScalarGridSpec(
            num_scalar_prefetch=0,
            grid=grid,
            in_specs=[x_spec, w_spec],
            out_specs=o_spec,
            scratch_shapes=scratch,
        ),
        compiler_params=pltpu.CompilerParams(
            dimension_semantics=("parallel", "parallel", "arbitrary"),
            vmem_limit_bytes=vmem_limit,
        ),
    )(x_in, w_in)
    return out.reshape(*orig_shape[:-1], N)


if __name__ == "__main__":
    # Small shapes consistent with the module: (batch, seq, d_model) -> (batch, seq, d_vocab)
    batch, seq, d_model, d_vocab = 2, 8, 32, 64

    key = jax.random.PRNGKey(0)
    kx, kw = jax.random.split(key)
    x = jax.random.normal(kx, (batch, seq, d_model), dtype=jnp.float32)
    # Deterministic init mimicking nn.Linear default (uniform in +/- 1/sqrt(d_model)).
    bound = 1.0 / (d_model ** 0.5)
    weight = jax.random.uniform(
        kw, (d_vocab, d_model), minval=-bound, maxval=bound, dtype=jnp.float32
    )

    fwd = jax.jit(predictor_forward)
    y = jax.block_until_ready(fwd(x, weight))

    # Correctness check against plain JAX reference.
    y_ref = x @ weight.T
    assert y.shape == (batch, seq, d_vocab)
    assert jnp.allclose(y, y_ref, atol=1e-5, rtol=1e-5)

    print("KERNEL_OK")
</pallas_src>

<mosaic_0001>
module attributes {stable_mosaic.version = 11 : i64} {
  func.func @_fullk_kernel(%arg0: i32, %arg1: i32, %arg2: memref<16x32xf32, #tpu.memory_space<vmem>>, %arg3: memref<64x32xf32, #tpu.memory_space<vmem>>, %arg4: memref<16x64xf32, #tpu.memory_space<vmem>>) attributes {dimension_semantics = [#tpu.dimension_semantics<parallel>, #tpu.dimension_semantics<parallel>], iteration_bounds = array<i64: 1, 1>, scalar_prefetch = 0 : i64, scratch_operands = 0 : i64, tpu.core_type = #tpu.core_type<tc>, window_params = [{transform_indices = @transform_0, window_bounds = array<i64: 16, 32>}, {transform_indices = @transform_1, window_bounds = array<i64: 64, 32>}, {transform_indices = @transform_2, window_bounds = array<i64: 16, 64>}]} {
    %c0 = arith.constant 0 : index
    %c0_0 = arith.constant 0 : index
    %0 = vector.load %arg2[%c0, %c0_0] : memref<16x32xf32, #tpu.memory_space<vmem>>, vector<16x32xf32>
    %c0_1 = arith.constant 0 : index
    %c0_2 = arith.constant 0 : index
    %1 = vector.load %arg3[%c0_1, %c0_2] : memref<64x32xf32, #tpu.memory_space<vmem>>, vector<64x32xf32>
    %cst = arith.constant dense<0.000000e+00> : vector<16x64xf32>
    %2 = tpu.matmul %0, %1, %cst {dimension_numbers = #tpu.dot_dimension_numbers<[1], [1], [0], [0], [0, 0, 1, 0], [], []>} : vector<16x32xf32>, vector<64x32xf32>, vector<16x64xf32> -> vector<16x64xf32>
    %c0_3 = arith.constant 0 : index
    %c0_4 = arith.constant 0 : index
    %3 = vector.load %arg4[%c0_3, %c0_4] : memref<16x64xf32, #tpu.memory_space<vmem>>, vector<16x64xf32>
    tpu.vector_store %arg4[%c0_3, %c0_4], %2 {strides = array<i32>} : memref<16x64xf32, #tpu.memory_space<vmem>>, vector<16x64xf32>,
    return
  }
  func.func @transform_0(%arg0: i32, %arg1: i32) -> (i32, i32) {
    %c0_i32 = arith.constant 0 : i32
    %c0_i32_0 = arith.constant 0 : i32
    return %arg1, %c0_i32 : i32, i32
  }
  func.func @transform_1(%arg0: i32, %arg1: i32) -> (i32, i32) {
    %c0_i32 = arith.constant 0 : i32
    %c0_i32_0 = arith.constant 0 : i32
    return %arg0, %c0_i32 : i32, i32
  }
  func.func @transform_2(%arg0: i32, %arg1: i32) -> (i32, i32) {
    %c0_i32 = arith.constant 0 : i32
    return %arg1, %arg0 : i32, i32
  }
}

</mosaic_0001>

<llo_original>
// kernel: predictor_forward.1
$region0: #{predictor_forward.1}
  #allocation0 [shape = 'u32[]', space=smem, size = 0x4, offset = 0x4, fixed_abs, tag = 'smem constant byte address 0x4 - core index']
  #allocation1 [shape = 'u32[144,128]{1,0:T(1,128)}', space=vmem, size = 0x12000, scoped, tag = 'internal scratch']
  %s0 = inlined_call_operand.vmem [shape: f32[16,32], index: 0, kind: input, shape index: {}]
  %s1 = inlined_call_operand.vmem [shape: f32[64,32], index: 1, kind: input, shape index: {}]
  %s2 = inlined_call_operand.hbm [shape: f32[16,64], index: 2, kind: output, shape index: {}]
  %s3 = sld [smem:[#allocation0]]
  $region18: #{predictor_forward.1} parent=0
    _
  %s5 = ssub.s32 1, %s3
  %s6 = scalar_select 0, %s5, %s3
  $region1: #{predictor_forward.1} parent=0
    #allocation2 [shape = 'u8[8192]{0}', space=vmem, size = 0x2000, scoped, tag = 'output window, operand 0, single buffered']
    #allocation3 [shape = 's32[1]{0}', space=sflag, size = 0x4, scoped, tag = 'scoped memory for predictor_forward.1']
    %7 = vsyncpa [#allocation3], 0
    // Predicated region
    $region2: #{predictor_forward.1} parent=1 // pred_check
      _
    $region3: #{predictor_forward.1} parent=1 // pred_check_branch
      %9 = sbr.rel (0) target = $region5
    $region4: #{predictor_forward.1} parent=1 // pred_region
      _
    $region5: #{predictor_forward.1} parent=1 // pred_fallthru
      _
    // Predicated region
    $region6: #{predictor_forward.1} parent=1 // pred_check
      _
    $region7: #{predictor_forward.1} parent=1 // pred_check_branch
      %11 = sbr.rel (0) target = $region9
    $region8: #{predictor_forward.1} parent=1 // pred_region
      _
    $region9: #{predictor_forward.1} parent=1 // pred_fallthru
      _
    %v12 = vld [vmem:[%s0] sm:$0xff]
    %v13 = vld [vmem:[%s0 + $0x8] sm:$0xff]
    %v14 = vld [vmem:[%s1] sm:$0xff]
    %v15 = vld [vmem:[%s1 + $0x8] sm:$0xff]
    %v16 = vld [vmem:[%s1 + $0x10] sm:$0xff]
    %v17 = vld [vmem:[%s1 + $0x18] sm:$0xff]
    %v18 = vld [vmem:[%s1 + $0x20] sm:$0xff]
    %v19 = vld [vmem:[%s1 + $0x28] sm:$0xff]
    %v20 = vld [vmem:[%s1 + $0x30] sm:$0xff]
    %v21 = vld [vmem:[%s1 + $0x38] sm:$0xff]
    %vm22 = vcmask 261120
    %v24 = vsel %vm22, %v12, 0
    %v27 = vsel %vm22, %v13, 0
    %v30 = vsel %vm22, %v14, 0
    %v33 = vsel %vm22, %v15, 0
    %v36 = vsel %vm22, %v16, 0
    %v39 = vsel %vm22, %v17, 0
    %v42 = vsel %vm22, %v18, 0
    %v45 = vsel %vm22, %v19, 0
    %v48 = vsel %vm22, %v20, 0
    %v51 = vsel %vm22, %v21, 0
    %53 = vmatprep.subr.mxu0 0.0
    %54 = vmatpush1.xpose.msra.mxu0 %v30
    %55 = vmatprep.subr.mxu0 0.0
    %56 = vmatpush1.xpose.msra.mxu0 %v33
    %57 = vmatprep.subr.mxu0 0.0
    %58 = vmatpush1.xpose.msra.mxu0 %v36
    %59 = vmatprep.subr.mxu0 0.0
    %60 = vmatpush1.xpose.msra.mxu0 %v39
    %61 = vmatprep.subr.mxu0 0.0
    %62 = vmatpush1.xpose.msra.mxu0 %v42
    %63 = vmatprep.subr.mxu0 0.0
    %64 = vmatpush1.xpose.msra.mxu0 %v45
    %65 = vmatprep.subr.mxu0 0.0
    %66 = vmatpush1.xpose.msra.mxu0 %v48
    %67 = vmatprep.subr.mxu0 0.0
    %68 = vmatpush1.xpose.msra.mxu0 %v51
    %69 = vmatprep.subr.mxu0 0.0
    %70 = vmatpush1.xpose.msra.mxu0 0.0
    %71 = vmatprep.subr.mxu0 0.0
    %72 = vmatpush1.xpose.msra.mxu0 0.0
    %73 = vmatprep.subr.mxu0 0.0
    %74 = vmatpush1.xpose.msra.mxu0 0.0
    %75 = vmatprep.subr.mxu0 0.0
    %76 = vmatpush1.xpose.msra.mxu0 0.0
    %77 = vmatprep.subr.mxu0 0.0
    %78 = vmatpush1.xpose.msra.mxu0 0.0
    %79 = vmatprep.subr.mxu0 0.0
    %80 = vmatpush1.xpose.msra.mxu0 0.0
    %81 = vmatprep.subr.mxu0 0.0
    %82 = vmatpush1.xpose.msra.mxu0 0.0
    %83 = vmatprep.subr.mxu0 0.0
    %84 = vmatpush1.xpose.msra.mxu0 0.0
    %85 = vmatprep.subr.mxu0 0.0
    %86 = vmatpush1.xpose.msra.mxu0 0.0
    %87 = vmatprep.subr.mxu0 0.0
    %88 = vmatpush1.xpose.msra.mxu0 0.0
    %89 = vmatprep.subr.mxu0 0.0
    %90 = vmatpush1.xpose.msra.mxu0 0.0
    %91 = vmatprep.subr.mxu0 0.0
    %92 = vmatpush1.xpose.msra.mxu0 0.0
    %93 = vmatprep.subr.mxu0 0.0
    %94 = vmatpush1.xpose.msra.mxu0 0.0
    %95 = vmatprep.subr.mxu0 0.0
    %96 = vmatpush1.xpose.msra.mxu0 0.0
    %97 = vmatprep.subr.mxu0 0.0
    %98 = vmatpush1.xpose.msra.mxu0 0.0
    %99 = vmatprep.subr.mxu0 0.0
    %100 = vmatpush1.xpose.msra.mxu0 0.0
    %101 = vmatprep.subr.mxu0 0.0
    %102 = vmatpush1.xpose.msra.mxu0 0.0
    %103 = vmatprep.subr.mxu0 0.0
    %104 = vmatpush1.xpose.msra.mxu0 0.0
    %105 = vmatprep.subr.mxu0 0.0
    %106 = vmatpush1.xpose.msra.mxu0 0.0
    %107 = vmatprep.subr.mxu0 0.0
    %108 = vmatpush1.xpose.msra.mxu0 0.0
    %109 = vmatprep.subr.mxu0 0.0
    %110 = vmatpush1.xpose.msra.mxu0 0.0
    %111 = vmatprep.subr.mxu0 0.0
    %112 = vmatpush1.xpose.msra.mxu0 0.0
    %113 = vmatprep.subr.mxu0 0.0
    %114 = vmatpush1.xpose.msra.mxu0 0.0
    %115 = vmatprep.subr.mxu0 0.0
    %116 = vmatpush1.xpose.msra.mxu0 0.0
    %117 = vmatprep.mubr.f32.mxu0 0.0
    %118 = vmatmul.mubr.f32.gmra.mrb[0].mxu0 %v24
    %v119 = vpop.f32.mrb[0].mxu0
    %v120 = vadd.f32 0.0, %v119
    %v121 = vpop.f32.mrb[0].mxu0
    %122 = vmatprep.mubr.f32.mxu0 0.0
    %123 = vmatmul.mubr.f32.gmra.mrb[0].mxu0 %v27
    %v124 = vpop.f32.mrb[0].mxu0
    %v125 = vadd.f32 0.0, %v124
    %v126 = vpop.f32.mrb[0].mxu0
    %127 = vdwg.mxu0
    %vm128 = vcmask 523264
    %129 = vst.msk [vmem:[#allocation2] sm:$0xff] %vm128, %v120
    %130 = vst.msk [vmem:[#allocation2 + $0x8] sm:$0xff] %vm128, %v125
    // Predicated region
    $region10: #{predictor_forward.1} parent=1 // pred_check
      _
    $region11: #{predictor_forward.1} parent=1 // pred_check_branch
      %132 = sbr.rel (0) target = $region13
    $region12: #{predictor_forward.1} parent=1 // pred_region
      %s134 = ssub.s32 256, 256
      %135 = vsyncadd [#allocation3], %s134
      %s136 = sshll.u32 [#allocation2], 4
      %s137 = int_to_ptr.vmem [resolvable:$true] %s136
      %142 = dma.vmem_to_hbm [thread:$0]  %s137, 256, %s2, [#allocation3], 128, 128, 8
    $region13: #{predictor_forward.1} parent=1 // pred_fallthru
      _
    // Predicated region
    $region14: #{predictor_forward.1} parent=1 // pred_check
      _
    $region15: #{predictor_forward.1} parent=1 // pred_check_branch
      %144 = sbr.rel (0) target = $region17
    $region16: #{predictor_forward.1} parent=1 // pred_region
      %145 = dma.done [#allocation3], 256
    $region17: #{predictor_forward.1} parent=1 // pred_fallthru
      _
    %146 = vsyncpa [#allocation3], 1

</llo_original>
